<compile_context>
chip_gen: v7x
topology: tpu7x:2x2x1
jax: 0.10.0
libtpu: 0.0.40
codegen_flags: <defaults>
</compile_context>

<pallas_src>
import functools

import jax
import jax.numpy as jnp
from jax import lax
from jax.experimental import pallas as pl
from jax.experimental.pallas import tpu as pltpu


def _conv1d_relu_kernel(x_ref, w_ref, b_ref, o_ref, *, K, L_out, stride):
    # x_ref: (C_in, B_blk, L_pad)    batch folded behind channels by the wrapper
    # w_ref: (C_out, K*C_in)         w_ref[o, k*C_in + c] == weight[o, c, k]   (resident)
    # b_ref: (C_out, 1)
    # o_ref: (C_out, B_blk*L_out)    lane axis = (batch, position): lane-dense stores
    c_in, b_blk, _ = x_ref.shape
    x = x_ref[...]

    # Build the im2col RHS: K shifted views stacked along sublanes -> (K*C_in, B_blk*L_out).
    span = (L_out - 1) * stride + 1
    taps = []
    for k in range(K):                                 # static unroll over taps
        # NOTE: stride is a static Python int; for the default stride=1 this is a
        # contiguous lane slice (no cross-lane gather).
        xk = x[:, :, k:k + span:stride]                # (C_in, B_blk, L_out)
        taps.append(xk.reshape(c_in, b_blk * L_out))   # fold batch into lanes
    rhs = jnp.concatenate(taps, axis=0)                # (K*C_in, B_blk*L_out)

    # One MXU matmul: contraction over C_in*K, f32 accumulation.
    acc = jnp.dot(w_ref[...], rhs, preferred_element_type=jnp.float32)  # (C_out, B_blk*L_out)
    acc = acc + b_ref[...]                             # bias broadcast along lanes (f32)
    # nonlinearity='relu' (module default); batchnorm=False (module default)
    o_ref[...] = jnp.maximum(acc, 0.0).astype(o_ref.dtype)


def _pick_batch_block(n, l_out):
    """Batch elements per grid step and the padded batch size.

    Legal + efficient blockings: either a single block covering the whole (padded) batch,
    or a multiple-of-8 block whose output lane width (b * l_out) is a multiple of 128
    (unmasked vst, dense vregs)."""
    if n <= 8:
        return n, n
    b = 8
    while b < n and (b * l_out) % 128 != 0:
        b *= 2
    if b >= n or (b * l_out) % 128 != 0:
        return n, n
    n_pad = pl.cdiv(n, b) * b
    return b, n_pad


def conv1d_layer_forward(x, weight, bias, *, stride=1, padding=0, compute_dtype=None):
    """Pallas implementation of Conv1DLayer.forward (Conv1d -> ReLU, batchnorm off).

    compute_dtype: dtype fed to the MXU (e.g. jnp.bfloat16 on v6e/v7x); accumulation and
    the bias/ReLU epilogue stay in float32, output keeps x.dtype.
    """
    if x.ndim != 3:
        raise ValueError("Expects 3D input!")
    N, C_in, L = x.shape
    C_out, C_in_w, K = weight.shape
    if C_in_w != C_in:
        raise ValueError("Channel mismatch between input and weight!")
    L_out = (L + 2 * padding - K) // stride + 1
    L_pad = L + 2 * padding
    out_dtype = x.dtype
    if compute_dtype is None:
        compute_dtype = x.dtype

    B_blk, N_pad = _pick_batch_block(N, L_out)

    # Layout plumbing (one fused XLA copy): fold batch behind channels and apply the conv
    # padding here, so no separate padded HBM copy is created and the kernel's matmul
    # output is lane-dense.
    x_t = jnp.transpose(x, (1, 0, 2)).astype(compute_dtype)                # (C_in, N, L)
    x_t = jnp.pad(x_t, ((0, 0), (0, N_pad - N), (padding, padding)))       # (C_in, N_pad, L_pad)
    # weight (C_out, C_in, K) -> (C_out, K*C_in); column k*C_in + c matches the im2col row order.
    w2 = jnp.transpose(weight, (0, 2, 1)).reshape(C_out, K * C_in).astype(compute_dtype)
    b2 = bias.reshape(C_out, 1).astype(jnp.float32)

    kernel = functools.partial(_conv1d_relu_kernel, K=K, L_out=L_out, stride=stride)

    in_itemsize = jnp.dtype(compute_dtype).itemsize
    cost = pl.CostEstimate(
        flops=2 * N_pad * C_out * C_in * K * L_out,
        transcendentals=0,
        bytes_accessed=(x_t.size * in_itemsize + w2.size * in_itemsize + b2.size * 4
                        + C_out * N_pad * L_out * jnp.dtype(out_dtype).itemsize),
    )

    # VMEM per step: x tile (C_in*B_blk*L_pad) + weights + out tile — well under the scoped
    # default on v5e/v6e/v7x for these block sizes, so no explicit vmem_limit_bytes needed.
    out = pl.pallas_call(
        kernel,
        out_shape=jax.ShapeDtypeStruct((C_out, N_pad * L_out), out_dtype),
        grid=(N_pad // B_blk,),
        in_specs=[
            pl.BlockSpec((C_in, B_blk, L_pad), lambda i: (0, i, 0)),   # B_blk batches per step
            pl.BlockSpec((C_out, K * C_in), lambda i: (0, 0)),         # full weights, resident
            pl.BlockSpec((C_out, 1), lambda i: (0, 0)),                # bias
        ],
        out_specs=pl.BlockSpec((C_out, B_blk * L_out), lambda i: (0, i)),
        compiler_params=pltpu.CompilerParams(dimension_semantics=("parallel",)),
        cost_estimate=cost,
    )(x_t, w2, b2)

    # Undo the layout plumbing: (C_out, N_pad*L_out) -> (N, C_out, L_out).
    out = out.reshape(C_out, N_pad, L_out)[:, :N, :]
    return jnp.transpose(out, (1, 0, 2))


def _reference_forward(x, weight, bias, *, stride=1, padding=0):
    out = lax.conv_general_dilated(
        x, weight,
        window_strides=(stride,),
        padding=[(padding, padding)],
        dimension_numbers=("NCH", "OIH", "NCH"),
    )
    out = out + bias[None, :, None]
    return jnp.maximum(out, 0.0)


if __name__ == "__main__":
    # Conv1DLayer(in_channels=4, out_channels=8, kernel_size=3, stride=1, padding=1,
    #             bias=True, batchnorm=False, nonlinearity='relu')
    N, C_in, C_out, L, K = 2, 4, 8, 16, 3
    stride, padding = 1, 1

    key = jax.random.PRNGKey(0)
    kx, kw, kb = jax.random.split(key, 3)
    x = jax.random.normal(kx, (N, C_in, L), dtype=jnp.float32)
    # Deterministic synthetic parameters (kaiming-normal-ish scale for the weight).
    fan_in = C_in * K
    weight = jax.random.normal(kw, (C_out, C_in, K), dtype=jnp.float32) * (2.0 / fan_in) ** 0.5
    bias = jax.random.normal(kb, (C_out,), dtype=jnp.float32) * 0.01

    ref = _reference_forward(x, weight, bias, stride=stride, padding=padding)

    # f32 compute path (v5e-style): tight tolerance.
    out = conv1d_layer_forward(x, weight, bias, stride=stride, padding=padding)
    out = jax.block_until_ready(out)
    assert out.shape == ref.shape
    assert jnp.allclose(out, ref, atol=1e-5, rtol=1e-5)

    # bf16 compute path (what you'd use on v6e/v7x); f32 accumulation, f32 output.
    out_bf16 = conv1d_layer_forward(x, weight, bias, stride=stride, padding=padding,
                                    compute_dtype=jnp.bfloat16)
    out_bf16 = jax.block_until_ready(out_bf16)
    ref_bf16 = _reference_forward(
        x.astype(jnp.bfloat16).astype(jnp.float32),
        weight.astype(jnp.bfloat16).astype(jnp.float32),
        bias, stride=stride, padding=padding)
    assert jnp.allclose(out_bf16, ref_bf16, atol=1e-3, rtol=1e-3)

    print("KERNEL_OK")
</pallas_src>

<mosaic_0001>
module attributes {stable_mosaic.version = 11 : i64} {
  func.func @_conv1d_relu_kernel(%arg0: i32, %arg1: memref<4x2x18xf32, #tpu.memory_space<vmem>>, %arg2: memref<8x12xf32, #tpu.memory_space<vmem>>, %arg3: memref<8x1xf32, #tpu.memory_space<vmem>>, %arg4: memref<8x32xf32, #tpu.memory_space<vmem>>) attributes {dimension_semantics = [#tpu.dimension_semantics<parallel>], iteration_bounds = array<i64: 1>, scalar_prefetch = 0 : i64, scratch_operands = 0 : i64, tpu.core_type = #tpu.core_type<tc>, window_params = [{transform_indices = @transform_0, window_bounds = array<i64: 4, 2, 18>}, {pipeline_mode = #tpu.pipeline_mode<synchronous>, transform_indices = @transform_1, window_bounds = array<i64: 8, 12>}, {pipeline_mode = #tpu.pipeline_mode<synchronous>, transform_indices = @transform_2, window_bounds = array<i64: 8, 1>}, {transform_indices = @transform_3, window_bounds = array<i64: 8, 32>}]} {
    %c0 = arith.constant 0 : index
    %c0_0 = arith.constant 0 : index
    %c0_1 = arith.constant 0 : index
    %0 = vector.load %arg1[%c0, %c0_0, %c0_1] : memref<4x2x18xf32, #tpu.memory_space<vmem>>, vector<4x2x18xf32>
    %1 = vector.extract_strided_slice %0 {offsets = [0, 0, 0], sizes = [4, 2, 16], strides = [1, 1, 1]} : vector<4x2x18xf32> to vector<4x2x16xf32>
    %2 = vector.shape_cast %1 : vector<4x2x16xf32> to vector<4x32xf32>
    %3 = vector.extract_strided_slice %0 {offsets = [0, 0, 1], sizes = [4, 2, 16], strides = [1, 1, 1]} : vector<4x2x18xf32> to vector<4x2x16xf32>
    %4 = vector.shape_cast %3 : vector<4x2x16xf32> to vector<4x32xf32>
    %5 = vector.extract_strided_slice %0 {offsets = [0, 0, 2], sizes = [4, 2, 16], strides = [1, 1, 1]} : vector<4x2x18xf32> to vector<4x2x16xf32>
    %6 = vector.shape_cast %5 : vector<4x2x16xf32> to vector<4x32xf32>
    %7 = tpu.concatenate %2, %4, %6 in 0 : vector<4x32xf32>, vector<4x32xf32>, vector<4x32xf32> -> vector<12x32xf32>
    %c0_2 = arith.constant 0 : index
    %c0_3 = arith.constant 0 : index
    %8 = vector.load %arg2[%c0_2, %c0_3] : memref<8x12xf32, #tpu.memory_space<vmem>>, vector<8x12xf32>
    %cst = arith.constant dense<0.000000e+00> : vector<8x32xf32>
    %9 = tpu.matmul %8, %7, %cst {dimension_numbers = #tpu.dot_dimension_numbers<[1], [0], [0], [1], [0, 0, 1, 1], [], []>} : vector<8x12xf32>, vector<12x32xf32>, vector<8x32xf32> -> vector<8x32xf32>
    %c0_4 = arith.constant 0 : index
    %c0_5 = arith.constant 0 : index
    %10 = vector.load %arg3[%c0_4, %c0_5] : memref<8x1xf32, #tpu.memory_space<vmem>>, vector<8x1xf32>
    %11 = vector.broadcast %10 : vector<8x1xf32> to vector<8x32xf32>
    %12 = arith.addf %9, %11 : vector<8x32xf32>
    %cst_6 = arith.constant 0.000000e+00 : f32
    %13 = vector.broadcast %cst_6 : f32 to vector<8x32xf32>
    %14 = arith.maximumf %12, %13 : vector<8x32xf32>
    %c0_7 = arith.constant 0 : index
    %c0_8 = arith.constant 0 : index
    %15 = vector.load %arg4[%c0_7, %c0_8] : memref<8x32xf32, #tpu.memory_space<vmem>>, vector<8x32xf32>
    tpu.vector_store %arg4[%c0_7, %c0_8], %14 {strides = array<i32>} : memref<8x32xf32, #tpu.memory_space<vmem>>, vector<8x32xf32>,
    return
  }
  func.func @transform_0(%arg0: i32) -> (i32, i32, i32) {
    %c0_i32 = arith.constant 0 : i32
    %c0_i32_0 = arith.constant 0 : i32
    %c0_i32_1 = arith.constant 0 : i32
    return %c0_i32, %arg0, %c0_i32_0 : i32, i32, i32
  }
  func.func @transform_1(%arg0: i32) -> (i32, i32) {
    %c0_i32 = arith.constant 0 : i32
    %c0_i32_0 = arith.constant 0 : i32
    %c0_i32_1 = arith.constant 0 : i32
    return %c0_i32, %c0_i32_0 : i32, i32
  }
  func.func @transform_2(%arg0: i32) -> (i32, i32) {
    %c0_i32 = arith.constant 0 : i32
    %c0_i32_0 = arith.constant 0 : i32
    %c0_i32_1 = arith.constant 0 : i32
    return %c0_i32, %c0_i32_0 : i32, i32
  }
  func.func @transform_3(%arg0: i32) -> (i32, i32) {
    %c0_i32 = arith.constant 0 : i32
    %c0_i32_0 = arith.constant 0 : i32
    return %c0_i32, %arg0 : i32, i32
  }
}

</mosaic_0001>

<llo_original>
// kernel: tpu_custom_call.1
$region0: #{tpu_custom_call.1}
  #allocation0 [shape = 'u32[]', space=smem, size = 0x4, offset = 0x4, fixed_abs, tag = 'smem constant byte address 0x4 - core index']
  #allocation1 [shape = 'u32[144,128]{1,0:T(1,128)}', space=vmem, size = 0x12000, scoped, tag = 'internal scratch']
  %s0 = inlined_call_operand.vmem [shape: f32[4,2,18], index: 0, kind: input, shape index: {}]
  %s1 = inlined_call_operand.hbm [shape: f32[8,12], index: 1, kind: input, shape index: {}]
  %s2 = inlined_call_operand.vmem [shape: f32[8,1], index: 2, kind: input, shape index: {}]
  %s3 = inlined_call_operand.hbm [shape: f32[8,32], index: 3, kind: output, shape index: {}]
  %s4 = sld [smem:[#allocation0]]
  $region26: #{tpu_custom_call.1} parent=0
    _
  %s6 = ssub.s32 1, %s4
  %s7 = scalar_select 0, %s6, %s4
  $region1: #{tpu_custom_call.1} parent=0
    #allocation2 [shape = 'u8[4096]{0}', space=vmem, size = 0x1000, scoped, tag = 'input window, operand 1, single buffered']
    #allocation3 [shape = 's32[1]{0}', space=sflag, size = 0x4, scoped, tag = 'scoped memory for tpu_custom_call.1']
    #allocation4 [shape = 's32[1]{0}', space=sflag, size = 0x4, scoped, tag = 'scoped memory for tpu_custom_call.1']
    #allocation5 [shape = 'u8[4096]{0}', space=vmem, size = 0x1000, scoped, tag = 'output window, operand 0, single buffered']
    %8 = vsyncpa [#allocation3], 0
    %9 = vsyncpa [#allocation4], 0
    // Predicated region
    $region2: #{tpu_custom_call.1} parent=1 // pred_check
      _
    $region3: #{tpu_custom_call.1} parent=1 // pred_check_branch
      %11 = sbr.rel (0) target = $region5
    $region4: #{tpu_custom_call.1} parent=1 // pred_region
      _
    $region5: #{tpu_custom_call.1} parent=1 // pred_fallthru
      _
    // Predicated region
    $region6: #{tpu_custom_call.1} parent=1 // pred_check
      _
    $region7: #{tpu_custom_call.1} parent=1 // pred_check_branch
      %13 = sbr.rel (0) target = $region9
    $region8: #{tpu_custom_call.1} parent=1 // pred_region
      %s15 = ssub.s32 128, 128
      %16 = vsyncadd [#allocation3], %s15
      %s18 = sshll.u32 [#allocation2], 4
      %s19 = int_to_ptr.vmem [resolvable:$true] %s18
      %21 = dma.hbm_to_vmem [thread:$0]  %s1, 128, %s19, [#allocation3]
    $region9: #{tpu_custom_call.1} parent=1 // pred_fallthru
      _
    // Predicated region
    $region10: #{tpu_custom_call.1} parent=1 // pred_check
      _
    $region11: #{tpu_custom_call.1} parent=1 // pred_check_branch
      %23 = sbr.rel (0) target = $region13
    $region12: #{tpu_custom_call.1} parent=1 // pred_region
      _
    $region13: #{tpu_custom_call.1} parent=1 // pred_fallthru
      _
    // Predicated region
    $region14: #{tpu_custom_call.1} parent=1 // pred_check
      _
    $region15: #{tpu_custom_call.1} parent=1 // pred_check_branch
      %25 = sbr.rel (0) target = $region17
    $region16: #{tpu_custom_call.1} parent=1 // pred_region
      %26 = dma.done [#allocation3], 128
    $region17: #{tpu_custom_call.1} parent=1 // pred_fallthru
      _
    %v27 = vld [vmem:[%s0] sm:$0x3]
    %v28 = vld [vmem:[%s0 + $0x2] sm:$0x3]
    %v29 = vld [vmem:[%s0 + $0x4] sm:$0x3]
    %v30 = vld [vmem:[%s0 + $0x6] sm:$0x3]
    %v31 = vcombine.low %v27, %v29
    %v33 = vunpack.c.l.s4 1983009808
    %v34 = vunpack.c.0.s8 %v33
    %v35 = vlaneseq
    %v36 = vshrl.u32 %v35, 7
    %v37 = vsub.s32 %v34, %v36
    %v38 = vrot.slane %v31, %v37
    %v39 = vcombine.low %v28, %v30
    %v41 = vunpack.c.l.s4 1983009808
    %v42 = vunpack.c.0.s8 %v41
    %v43 = vlaneseq
    %v44 = vshrl.u32 %v43, 7
    %v45 = vsub.s32 %v42, %v44
    %v46 = vrot.slane %v39, %v45
    %v47 = vcombine.low %v38, %v46
    %v49 = vunpack.c.l.s4 1934713408
    %v50 = vunpack.c.0.s8 %v49
    %v51 = vlaneseq
    %v52 = vshrl.u32 %v51, 7
    %v53 = vsub.s32 %v50, %v52
    %v54 = vrot.slane %v47, %v53
    %v55 = vcombine.high %v54, 0.0
    %57 = vrot.lane.b32.xlu0 %v55, 16
    %v58 = vpop.permute.xlu0 %57
    %vm60 = vcmask 130048
    %v61 = vsel %vm60, %v54, %v58
    %66 = vrot.lane.b32.xlu0 %v27, 127
    %v67 = vpop.permute.xlu0 %66
    %68 = vrot.lane.b32.xlu0 %v28, 127
    %v69 = vpop.permute.xlu0 %68
    %70 = vrot.lane.b32.xlu0 %v29, 127
    %v71 = vpop.permute.xlu0 %70
    %72 = vrot.lane.b32.xlu0 %v30, 127
    %v73 = vpop.permute.xlu0 %72
    %v78 = vcombine.low %v67, %v71
    %v80 = vunpack.c.l.s4 1983009808
    %v81 = vunpack.c.0.s8 %v80
    %v82 = vlaneseq
    %v83 = vshrl.u32 %v82, 7
    %v84 = vsub.s32 %v81, %v83
    %v85 = vrot.slane %v78, %v84
    %v86 = vcombine.low %v69, %v73
    %v88 = vunpack.c.l.s4 1983009808
    %v89 = vunpack.c.0.s8 %v88
    %v90 = vlaneseq
    %v91 = vshrl.u32 %v90, 7
    %v92 = vsub.s32 %v89, %v91
    %v93 = vrot.slane %v86, %v92
    %v94 = vcombine.low %v85, %v93
    %v96 = vunpack.c.l.s4 1934713408
    %v97 = vunpack.c.0.s8 %v96
    %v98 = vlaneseq
    %v99 = vshrl.u32 %v98, 7
    %v100 = vsub.s32 %v97, %v99
    %v101 = vrot.slane %v94, %v100
    %v102 = vcombine.high %v101, 0.0
    %104 = vrot.lane.b32.xlu0 %v102, 16
    %v105 = vpop.permute.xlu0 %104
    %v107 = vsel %vm60, %v101, %v105
    %108 = vrot.lane.b32.xlu0 %v27, 126
    %v109 = vpop.permute.xlu0 %108
    %110 = vrot.lane.b32.xlu0 %v28, 126
    %v111 = vpop.permute.xlu0 %110
    %112 = vrot.lane.b32.xlu0 %v29, 126
    %v113 = vpop.permute.xlu0 %112
    %114 = vrot.lane.b32.xlu0 %v30, 126
    %v115 = vpop.permute.xlu0 %114
    %v120 = vcombine.low %v109, %v113
    %v122 = vunpack.c.l.s4 1983009808
    %v123 = vunpack.c.0.s8 %v122
    %v124 = vlaneseq
    %v125 = vshrl.u32 %v124, 7
    %v126 = vsub.s32 %v123, %v125
    %v127 = vrot.slane %v120, %v126
    %v128 = vcombine.low %v111, %v115
    %v130 = vunpack.c.l.s4 1983009808
    %v131 = vunpack.c.0.s8 %v130
    %v132 = vlaneseq
    %v133 = vshrl.u32 %v132, 7
    %v134 = vsub.s32 %v131, %v133
    %v135 = vrot.slane %v128, %v134
    %v136 = vcombine.low %v127, %v135
    %v138 = vunpack.c.l.s4 1934713408
    %v139 = vunpack.c.0.s8 %v138
    %v140 = vlaneseq
    %v141 = vshrl.u32 %v140, 7
    %v142 = vsub.s32 %v139, %v141
    %v143 = vrot.slane %v136, %v142
    %v144 = vcombine.high %v143, 0.0
    %146 = vrot.lane.b32.xlu0 %v144, 16
    %v147 = vpop.permute.xlu0 %146
    %v149 = vsel %vm60, %v143, %v147
    %v151 = vrot.slane %v107, 4
    %vm153 = vcmask 1043456
    %v154 = vsel %vm153, %v61, %v151
    %v155 = vld [vmem:[#allocation2] sm:$0xff]
    %v156 = vld [vmem:[%s2] sm:$0xff]
    %158 = vset.pattern.permute.xlu0 0
    %159 = vperm.xlu0 %158, %v156
    %v160 = vpop.permute.xlu0 %159
    %vm162 = vcmask 97280
    %v164 = vsel %vm162, %v155, 0
    %v167 = vsel %vm153, %v149, 0
    %169 = vmatprep.subr.mxu0 0.0
    %170 = vmatpush1.msra.mxu0 %v154
    %171 = vmatprep.subr.mxu0 0.0
    %172 = vmatpush1.msra.mxu0 %v167
    %173 = vmatprep.subr.mxu0 0.0
    %174 = vmatpush1.msra.mxu0 0.0
    %175 = vmatprep.subr.mxu0 0.0
    %176 = vmatpush1.msra.mxu0 0.0
    %177 = vmatprep.subr.mxu0 0.0
    %178 = vmatpush1.msra.mxu0 0.0
    %179 = vmatprep.subr.mxu0 0.0
    %180 = vmatpush1.msra.mxu0 0.0
    %181 = vmatprep.subr.mxu0 0.0
    %182 = vmatpush1.msra.mxu0 0.0
    %183 = vmatprep.subr.mxu0 0.0
    %184 = vmatpush1.msra.mxu0 0.0
    %185 = vmatprep.subr.mxu0 0.0
    %186 = vmatpush1.msra.mxu0 0.0
    %187 = vmatprep.subr.mxu0 0.0
    %188 = vmatpush1.msra.mxu0 0.0
    %189 = vmatprep.subr.mxu0 0.0
    %190 = vmatpush1.msra.mxu0 0.0
    %191 = vmatprep.subr.mxu0 0.0
    %192 = vmatpush1.msra.mxu0 0.0
    %193 = vmatprep.subr.mxu0 0.0
    %194 = vmatpush1.msra.mxu0 0.0
    %195 = vmatprep.subr.mxu0 0.0
    %196 = vmatpush1.msra.mxu0 0.0
    %197 = vmatprep.subr.mxu0 0.0
    %198 = vmatpush1.msra.mxu0 0.0
    %199 = vmatprep.subr.mxu0 0.0
    %200 = vmatpush1.msra.mxu0 0.0
    %201 = vmatprep.subr.mxu0 0.0
    %202 = vmatpush1.msra.mxu0 0.0
    %203 = vmatprep.subr.mxu0 0.0
    %204 = vmatpush1.msra.mxu0 0.0
    %205 = vmatprep.subr.mxu0 0.0
    %206 = vmatpush1.msra.mxu0 0.0
    %207 = vmatprep.subr.mxu0 0.0
    %208 = vmatpush1.msra.mxu0 0.0
    %209 = vmatprep.subr.mxu0 0.0
    %210 = vmatpush1.msra.mxu0 0.0
    %211 = vmatprep.subr.mxu0 0.0
    %212 = vmatpush1.msra.mxu0 0.0
    %213 = vmatprep.subr.mxu0 0.0
    %214 = vmatpush1.msra.mxu0 0.0
    %215 = vmatprep.subr.mxu0 0.0
    %216 = vmatpush1.msra.mxu0 0.0
    %217 = vmatprep.subr.mxu0 0.0
    %218 = vmatpush1.msra.mxu0 0.0
    %219 = vmatprep.subr.mxu0 0.0
    %220 = vmatpush1.msra.mxu0 0.0
    %221 = vmatprep.subr.mxu0 0.0
    %222 = vmatpush1.msra.mxu0 0.0
    %223 = vmatprep.subr.mxu0 0.0
    %224 = vmatpush1.msra.mxu0 0.0
    %225 = vmatprep.subr.mxu0 0.0
    %226 = vmatpush1.msra.mxu0 0.0
    %227 = vmatprep.subr.mxu0 0.0
    %228 = vmatpush1.msra.mxu0 0.0
    %229 = vmatprep.subr.mxu0 0.0
    %230 = vmatpush1.msra.mxu0 0.0
    %231 = vmatprep.subr.mxu0 0.0
    %232 = vmatpush1.msra.mxu0 0.0
    %233 = vmatprep.mubr.f32.mxu0 0.0
    %234 = vmatmul.mubr.f32.gmra.mrb[0].mxu0 %v164
    %v235 = vpop.f32.mrb[0].mxu0
    %v236 = vadd.f32 %v160, %v235
    %v237 = vpop.f32.mrb[0].mxu0
    %238 = vdwg.mxu0
    %v239 = vmax.f32 %v236, 0.0
    %vm240 = vcmask 261120
    %241 = vst.msk [vmem:[#allocation5] sm:$0xff] %vm240, %v239
    // Predicated region
    $region18: #{tpu_custom_call.1} parent=1 // pred_check
      _
    $region19: #{tpu_custom_call.1} parent=1 // pred_check_branch
      %243 = sbr.rel (0) target = $region21
    $region20: #{tpu_custom_call.1} parent=1 // pred_region
      %s245 = ssub.s32 128, 128
      %246 = vsyncadd [#allocation4], %s245
      %s248 = sshll.u32 [#allocation5], 4
      %s249 = int_to_ptr.vmem [resolvable:$true] %s248
      %251 = dma.vmem_to_hbm [thread:$0]  %s249, 128, %s3, [#allocation4]
    $region21: #{tpu_custom_call.1} parent=1 // pred_fallthru
      _
    // Predicated region
    $region22: #{tpu_custom_call.1} parent=1 // pred_check
      _
    $region23: #{tpu_custom_call.1} parent=1 // pred_check_branch
      %253 = sbr.rel (0) target = $region25
    $region24: #{tpu_custom_call.1} parent=1 // pred_region
      %254 = dma.done [#allocation4], 128
    $region25: #{tpu_custom_call.1} parent=1 // pred_fallthru
      _
    %255 = vsyncpa [#allocation3], 1
    %256 = vsyncpa [#allocation4], 1

</llo_original>
